<compile_context>
chip_gen: v6e
topology: v6e:2x2x1
jax: 0.10.0
libtpu: 0.0.40
codegen_flags: <defaults>
</compile_context>

<pallas_src>
import functools

import jax
import jax.numpy as jnp
from jax.experimental import pallas as pl
from jax.experimental.pallas import tpu as pltpu


# ---------------------------------------------------------------------------
# Kernel
# ---------------------------------------------------------------------------
def spatial_attention_kernel(v_ref, h_ref, wv_ref, bv_ref, wg_ref, bg_ref,
                             wh_ref, bh_ref, c_ref, alpha_ref, *,
                             t_dtype, use_mxu_for_c):
    TB, L, d = v_ref.shape          # block of TB batch elements
    k = wv_ref.shape[1]             # k == L by construction of the module

    V = v_ref[...]                                   # (TB, L, d), input dtype

    # a = W_v(V): contract the feature axis d directly on the 3-D block.
    # No (TB*L, d) reshape -> no sublane-merging relayout when L % 8 != 0.
    a = jax.lax.dot_general(
        V, wv_ref[...],
        dimension_numbers=(((2,), (0,)), ((), ())),
        preferred_element_type=jnp.float32) + bv_ref[...]          # (TB, L, k)

    # g = W_g(h): (TB, k).  Reference broadcast: b[b, l, :] = g[b, l] (k == L),
    # i.e. broadcast over the trailing k (lane) axis.
    g = (jnp.dot(h_ref[...], wg_ref[...], preferred_element_type=jnp.float32)
         + bg_ref[...])                                            # (TB, k)

    # tanh of the largest intermediate.  bf16 on v6e/v7x (bf16-native EUP/VPU,
    # halves the (TB, L, k) footprint); f32 on v5e (no bf16 VPU/EUP).
    t = jnp.tanh((a + g[:, :, None]).astype(t_dtype))              # (TB, L, k)

    # z = w_h(t) + b_h as a VPU lane reduction (k is tiny); f32 accumulation.
    # Result is lane-dense (TB, L).
    wh_row = wh_ref[...].reshape(1, 1, k)                          # f32
    z = jnp.sum(t.astype(jnp.float32) * wh_row, axis=-1) + bh_ref[0]

    # Softmax over the spatial axis L, per batch row (f32 throughout).  The
    # reciprocal rides the EUP (approx) + one Newton step -> rows sum to 1
    # to ~1e-7 with no VALU divide.
    m = jnp.max(z, axis=-1, keepdims=True)
    e = jnp.exp(z - m)
    denom = jnp.sum(e, axis=-1, keepdims=True)
    inv = pl.reciprocal(denom, approx=True)
    inv = inv * (2.0 - denom * inv)                                # Newton step
    alpha = e * inv
    alpha_ref[...] = alpha                           # lane-dense (TB, L) store

    if use_mxu_for_c:
        # c[b] = sum_l alpha[b, l] * V[b, l, :] as a batched (1, L) @ (L, d)
        # MXU matmul (preferred on v6e/v7x).
        c3 = jax.lax.dot_general(
            alpha[:, None, :].astype(V.dtype), V,
            dimension_numbers=(((2,), (1,)), ((0,), (0,))),
            preferred_element_type=jnp.float32)                    # (TB, 1, d)
        c_ref[...] = c3.reshape(TB, d)
    else:
        # v5e: M=1 batched matmuls serialize on MRF pops; the VPU multiply +
        # XLU sublane reduce is at least as good and frees the MXU.
        c_ref[...] = jnp.sum(alpha[:, :, None] * V.astype(jnp.float32), axis=1)


# ---------------------------------------------------------------------------
# Generation-aware planning
# ---------------------------------------------------------------------------
_GEN_CFG = {
    # budget          : target per-pallas_call working set used to size block_b
    # scoped_default  : Mosaic's default scoped-VMEM limit (don't bother below it)
    # limit_cap       : never request more scoped VMEM than this
    # cores           : TensorCores sharing the "parallel" grid axis
    # bf16_ok         : VPU/EUP are bf16-native (v6e/v7x)
    "v5e":     dict(budget=56 << 20, scoped_default=16 << 20, limit_cap=100 << 20,
                    cores=1, bf16_ok=False),
    "v6e":     dict(budget=88 << 20, scoped_default=32 << 20, limit_cap=110 << 20,
                    cores=1, bf16_ok=True),
    "v7x":     dict(budget=22 << 20, scoped_default=32 << 20, limit_cap=48 << 20,
                    cores=2, bf16_ok=True),
    "default": dict(budget=12 << 20, scoped_default=16 << 20, limit_cap=64 << 20,
                    cores=1, bf16_ok=False),
}


def _tpu_generation():
    try:
        kind = jax.devices()[0].device_kind.lower()
    except Exception:
        return "default"
    if "v7" in kind:
        return "v7x"
    if "v6" in kind:
        return "v6e"
    if "v5e" in kind or "v5 lite" in kind or "v5lite" in kind:
        return "v5e"
    return "default"


def _cdiv(a, b):
    return -(-a // b)


def _plan_block_b(B, per_row_bytes, fixed_bytes, cfg):
    """Largest batch block whose working set fits the per-generation budget."""
    avail = max(cfg["budget"] - fixed_bytes, per_row_bytes)
    bb = max(1, avail // per_row_bytes)
    if bb >= B:
        return B
    bb = max(8, (bb // 8) * 8)      # second-minor dims must be 8-aligned (or full)
    # v7x: keep the number of grid steps a multiple of the TC count so the
    # "parallel" batch axis splits evenly across both TensorCores.
    if cfg["cores"] > 1:
        cand = bb
        while cand > 8 and _cdiv(B, cand) % cfg["cores"] != 0:
            cand -= 8
        if _cdiv(B, cand) % cfg["cores"] == 0:
            bb = cand
    return min(bb, B)


# ---------------------------------------------------------------------------
# Wrapper
# ---------------------------------------------------------------------------
def spatial_attention(V, h, params, *, block_b=None, vmem_limit_bytes=None):
    """Pallas forward. Returns (c: (B, d) f32, alpha: (B, L) f32)."""
    B, L, d = V.shape
    k = params["wv"].shape[0]
    assert L == k, "reference module's expand() requires k == L"
    assert h.shape == (B, d)

    gen = _tpu_generation()
    cfg = _GEN_CFG[gen]

    # Weights follow the activation dtype so bf16 activations hit the native
    # bf16 MXU path; biases stay f32 (added after the f32 accumulate).
    w_dtype = jnp.bfloat16 if V.dtype == jnp.bfloat16 else jnp.float32
    wv_t = params["wv"].T.astype(w_dtype)            # (d, k)
    wg_t = params["wg"].T.astype(w_dtype)            # (d, k)
    wh_row = params["wh"].reshape(1, k).astype(jnp.float32)
    bv = params["bv"].reshape(1, k).astype(jnp.float32)
    bg = params["bg"].reshape(1, k).astype(jnp.float32)
    bh = params["bh"].reshape(1).astype(jnp.float32)
    h = h.astype(w_dtype)

    # bf16 tanh intermediate only where the VPU/EUP are bf16-native.
    t_dtype = jnp.bfloat16 if cfg["bf16_ok"] else jnp.float32
    use_mxu_for_c = gen != "v5e"

    v_item = jnp.dtype(V.dtype).itemsize
    w_item = jnp.dtype(w_dtype).itemsize
    t_item = jnp.dtype(t_dtype).itemsize

    # Per-batch-row working set of one grid step.
    per_row = (2 * L * d * v_item          # V block, double-buffered
               + 2 * d * w_item            # h block, double-buffered
               + L * k * (4 + t_item)      # a (f32) + tanh intermediate
               + 8 * L * 4                 # z/e/alpha temporaries + alpha out (2 bufs)
               + 6 * d * 4)                # c accumulation + c out (2 bufs)

    # Constant weights/biases: single-buffer them (Buffered(1)) only when they
    # are big enough to matter -- mostly a v7x 64-MiB concern.
    weight_copy_bytes = 2 * d * k * w_item + 3 * k * 4
    single_buffer_weights = weight_copy_bytes >= (1 << 20)
    w_copies = 1 if single_buffer_weights else 2
    fixed = w_copies * weight_copy_bytes + (1 << 20)   # + compiler-scratch headroom

    if block_b is None:
        block_b = _plan_block_b(B, per_row, fixed, cfg)
    block_b = max(1, min(block_b, B))
    nb = _cdiv(B, block_b)

    if vmem_limit_bytes is None:
        want = int(1.3 * (fixed + block_b * per_row))
        if want > cfg["scoped_default"]:
            vmem_limit_bytes = min(want, cfg["limit_cap"])

    def const_spec(shape):
        zeros = tuple(0 for _ in shape)
        if single_buffer_weights:
            return pl.BlockSpec(shape, lambda i: zeros,
                                pipeline_mode=pl.Buffered(1))
        return pl.BlockSpec(shape, lambda i: zeros)

    kernel = functools.partial(spatial_attention_kernel,
                               t_dtype=t_dtype, use_mxu_for_c=use_mxu_for_c)

    c, alpha = pl.pallas_call(
        kernel,
        out_shape=(
            jax.ShapeDtypeStruct((B, d), jnp.float32),
            jax.ShapeDtypeStruct((B, L), jnp.float32),
        ),
        grid_spec=pltpu.PrefetchScalarGridSpec(
            num_scalar_prefetch=0,
            grid=(nb,),
            in_specs=[
                pl.BlockSpec((block_b, L, d), lambda i: (i, 0, 0)),   # V block
                pl.BlockSpec((block_b, d), lambda i: (i, 0)),         # h block
                const_spec((d, k)),                                   # W_v^T
                const_spec((1, k)),                                   # b_v
                const_spec((d, k)),                                   # W_g^T
                const_spec((1, k)),                                   # b_g
                const_spec((1, k)),                                   # w_h row
                pl.BlockSpec(memory_space=pltpu.MemorySpace.SMEM),    # b_h
            ],
            out_specs=[
                pl.BlockSpec((block_b, d), lambda i: (i, 0)),         # c
                pl.BlockSpec((block_b, L), lambda i: (i, 0)),         # alpha
            ],
        ),
        compiler_params=pltpu.CompilerParams(
            dimension_semantics=("parallel",),
            vmem_limit_bytes=vmem_limit_bytes),
    )(V, h, wv_t, bv, wg_t, bg, wh_row, bh)

    return c, alpha


def spatial_attention_ref(V, h, params):
    """Pure-JAX reference mirroring the PyTorch forward exactly."""
    a = V @ params["wv"].T + params["bv"]                 # (B, L, k)
    g = h @ params["wg"].T + params["bg"]                 # (B, k), k == L
    b = g[:, :, None]                                     # unsqueeze(-1) + expand
    t = jnp.tanh(a + b)
    z = (t @ params["wh"].T + params["bh"])[..., 0]       # (B, L)
    alpha = jax.nn.softmax(z, axis=1)
    c = jnp.sum(alpha[..., None] * V, axis=1)
    return c, alpha


if __name__ == "__main__":
    def make_inputs(key, B, L, d, k, dtype=jnp.float32):
        ks = jax.random.split(key, 8)
        lim_d = float(1.0 / (d ** 0.5))
        lim_k = float(1.0 / (k ** 0.5))
        params = {
            "wv": jax.random.uniform(ks[0], (k, d), jnp.float32, -lim_d, lim_d),
            "bv": jax.random.uniform(ks[1], (k,), jnp.float32, -lim_d, lim_d),
            "wg": jax.random.uniform(ks[2], (k, d), jnp.float32, -lim_d, lim_d),
            "bg": jax.random.uniform(ks[3], (k,), jnp.float32, -lim_d, lim_d),
            "wh": jax.random.uniform(ks[4], (1, k), jnp.float32, -lim_k, lim_k),
            "bh": jax.random.uniform(ks[5], (1,), jnp.float32, -lim_k, lim_k),
        }
        V = jax.random.normal(ks[6], (B, L, d), jnp.float32).astype(dtype)
        h = jax.random.normal(ks[7], (B, d), jnp.float32).astype(dtype)
        return params, V, h

    # --- small config --------------------------------------------------------
    B, d, k = 2, 32, 8
    L = k  # required by the reference module's expand semantics
    params, V, h = make_inputs(jax.random.PRNGKey(0), B, L, d, k)

    c, alpha = spatial_attention(V, h, params)
    jax.block_until_ready((c, alpha))
    c_ref, alpha_ref = spatial_attention_ref(V, h, params)

    assert c.shape == (B, d) and alpha.shape == (B, L)
    # Tolerances sized for TPU matmul numerics: f32 dots at default precision
    # round operands to bf16 on the MXU; kernel and reference take those
    # roundings at different points (z on VPU vs MXU, c on MXU vs VPU).
    assert jnp.allclose(alpha, alpha_ref, atol=5e-3, rtol=5e-3), "alpha mismatch"
    assert jnp.allclose(c, c_ref, atol=1e-2, rtol=1e-2), "c mismatch"
    assert jnp.allclose(jnp.sum(alpha, axis=1), 1.0, atol=1e-4), "softmax norm"

    # bf16 activations: halves the O(B*L*d) HBM traffic; f32 accumulate inside.
    c16, a16 = spatial_attention(V.astype(jnp.bfloat16),
                                 h.astype(jnp.bfloat16), params)
    jax.block_until_ready((c16, a16))
    assert jnp.allclose(a16, alpha_ref, atol=2e-2, rtol=2e-2), "bf16 alpha"
    assert jnp.allclose(c16, c_ref, atol=5e-2, rtol=5e-2), "bf16 c"
    assert jnp.allclose(jnp.sum(a16, axis=1), 1.0, atol=1e-4), "bf16 norm"

    # --- "Knowing When to Look" shapes: L = k = 49 (7x7 spatial), forced
    # multi-step grid with a partial remainder block.  Exercises the
    # no-reshape (L % 8 != 0) dot_general path.
    B2, d2, k2 = 20, 256, 49
    L2 = k2
    params2, V2, h2 = make_inputs(jax.random.PRNGKey(1), B2, L2, d2, k2)
    c2, alpha2 = spatial_attention(V2, h2, params2, block_b=8)
    jax.block_until_ready((c2, alpha2))
    c2_ref, alpha2_ref = spatial_attention_ref(V2, h2, params2)
    assert c2.shape == (B2, d2) and alpha2.shape == (B2, L2)
    assert jnp.allclose(alpha2, alpha2_ref, atol=1.5e-2, rtol=1.5e-2), "alpha mismatch (L=49)"
    assert jnp.allclose(c2, c2_ref, atol=4e-2, rtol=2e-2), "c mismatch (L=49)"
    assert jnp.allclose(jnp.sum(alpha2, axis=1), 1.0, atol=1e-4), "softmax norm (L=49)"

    print("KERNEL_OK")
</pallas_src>

<mosaic_0001>
module attributes {stable_mosaic.version = 11 : i64} {
  func.func @spatial_attention_kernel(%arg0: i32, %arg1: memref<2x8x32xf32, #tpu.memory_space<vmem>>, %arg2: memref<2x32xf32, #tpu.memory_space<vmem>>, %arg3: memref<32x8xf32, #tpu.memory_space<vmem>>, %arg4: memref<1x8xf32, #tpu.memory_space<vmem>>, %arg5: memref<32x8xf32, #tpu.memory_space<vmem>>, %arg6: memref<1x8xf32, #tpu.memory_space<vmem>>, %arg7: memref<1x8xf32, #tpu.memory_space<vmem>>, %arg8: memref<1xf32, #tpu.memory_space<smem>>, %arg9: memref<2x32xf32, #tpu.memory_space<vmem>>, %arg10: memref<2x8xf32, #tpu.memory_space<vmem>>) attributes {dimension_semantics = [#tpu.dimension_semantics<parallel>], iteration_bounds = array<i64: 1>, scalar_prefetch = 0 : i64, scratch_operands = 0 : i64, tpu.core_type = #tpu.core_type<tc>, window_params = [{transform_indices = @transform_0, window_bounds = array<i64: 2, 8, 32>}, {transform_indices = @transform_1, window_bounds = array<i64: 2, 32>}, {pipeline_mode = #tpu.pipeline_mode<synchronous>, transform_indices = @transform_2, window_bounds = array<i64: 32, 8>}, {pipeline_mode = #tpu.pipeline_mode<synchronous>, transform_indices = @transform_3, window_bounds = array<i64: 1, 8>}, {pipeline_mode = #tpu.pipeline_mode<synchronous>, transform_indices = @transform_4, window_bounds = array<i64: 32, 8>}, {pipeline_mode = #tpu.pipeline_mode<synchronous>, transform_indices = @transform_5, window_bounds = array<i64: 1, 8>}, {pipeline_mode = #tpu.pipeline_mode<synchronous>, transform_indices = @transform_6, window_bounds = array<i64: 1, 8>}, {transform_indices = @transform_7, window_bounds = array<i64: 1>}, {transform_indices = @transform_8, window_bounds = array<i64: 2, 32>}, {transform_indices = @transform_9, window_bounds = array<i64: 2, 8>}]} {
    %c0 = arith.constant 0 : index
    %c0_0 = arith.constant 0 : index
    %c0_1 = arith.constant 0 : index
    %0 = vector.load %arg1[%c0, %c0_0, %c0_1] : memref<2x8x32xf32, #tpu.memory_space<vmem>>, vector<2x8x32xf32>
    %c0_2 = arith.constant 0 : index
    %c0_3 = arith.constant 0 : index
    %1 = vector.load %arg3[%c0_2, %c0_3] : memref<32x8xf32, #tpu.memory_space<vmem>>, vector<32x8xf32>
    %cst = arith.constant dense<0.000000e+00> : vector<2x8x8xf32>
    %2 = tpu.matmul %0, %1, %cst {dimension_numbers = #tpu.dot_dimension_numbers<[2], [0], [0, 1], [1], [0, 0, 0, 1, 1, 1], [], []>} : vector<2x8x32xf32>, vector<32x8xf32>, vector<2x8x8xf32> -> vector<2x8x8xf32>
    %c0_4 = arith.constant 0 : index
    %c0_5 = arith.constant 0 : index
    %3 = vector.load %arg4[%c0_4, %c0_5] : memref<1x8xf32, #tpu.memory_space<vmem>>, vector<1x8xf32>
    %4 = vector.shape_cast %3 : vector<1x8xf32> to vector<1x1x8xf32>
    %5 = vector.broadcast %4 : vector<1x1x8xf32> to vector<2x8x8xf32>
    %6 = arith.addf %2, %5 : vector<2x8x8xf32>
    %c0_6 = arith.constant 0 : index
    %c0_7 = arith.constant 0 : index
    %7 = vector.load %arg2[%c0_6, %c0_7] : memref<2x32xf32, #tpu.memory_space<vmem>>, vector<2x32xf32>
    %c0_8 = arith.constant 0 : index
    %c0_9 = arith.constant 0 : index
    %8 = vector.load %arg5[%c0_8, %c0_9] : memref<32x8xf32, #tpu.memory_space<vmem>>, vector<32x8xf32>
    %cst_10 = arith.constant dense<0.000000e+00> : vector<2x8xf32>
    %9 = tpu.matmul %7, %8, %cst_10 {dimension_numbers = #tpu.dot_dimension_numbers<[1], [0], [0], [1], [0, 0, 1, 1], [], []>} : vector<2x32xf32>, vector<32x8xf32>, vector<2x8xf32> -> vector<2x8xf32>
    %c0_11 = arith.constant 0 : index
    %c0_12 = arith.constant 0 : index
    %10 = vector.load %arg6[%c0_11, %c0_12] : memref<1x8xf32, #tpu.memory_space<vmem>>, vector<1x8xf32>
    %11 = vector.broadcast %10 : vector<1x8xf32> to vector<2x8xf32>
    %12 = arith.addf %9, %11 : vector<2x8xf32>
    %13 = vector.shape_cast %12 : vector<2x8xf32> to vector<2x8x1xf32>
    %14 = vector.broadcast %13 : vector<2x8x1xf32> to vector<2x8x8xf32>
    %15 = arith.addf %6, %14 : vector<2x8x8xf32>
    %16 = math.tanh %15 : vector<2x8x8xf32>
    %c0_13 = arith.constant 0 : index
    %c0_14 = arith.constant 0 : index
    %17 = vector.load %arg7[%c0_13, %c0_14] : memref<1x8xf32, #tpu.memory_space<vmem>>, vector<1x8xf32>
    %18 = vector.shape_cast %17 : vector<1x8xf32> to vector<1x1x8xf32>
    %19 = vector.broadcast %18 : vector<1x1x8xf32> to vector<2x8x8xf32>
    %20 = arith.mulf %16, %19 : vector<2x8x8xf32>
    %cst_15 = arith.constant dense<0.000000e+00> : vector<2x8xf32>
    %21 = vector.multi_reduction <add>, %20, %cst_15 [2] : vector<2x8x8xf32> to vector<2x8xf32>
    %c0_16 = arith.constant 0 : index
    %22 = memref.load %arg8[%c0_16] : memref<1xf32, #tpu.memory_space<smem>>
    %23 = vector.broadcast %22 : f32 to vector<2x8xf32>
    %24 = arith.addf %21, %23 : vector<2x8xf32>
    %cst_17 = arith.constant dense<0xFF800000> : vector<2xf32>
    %25 = vector.multi_reduction <maximumf>, %24, %cst_17 [1] : vector<2x8xf32> to vector<2xf32>
    %26 = vector.shape_cast %25 : vector<2xf32> to vector<2x1xf32>
    %27 = vector.broadcast %26 : vector<2x1xf32> to vector<2x8xf32>
    %28 = arith.subf %24, %27 : vector<2x8xf32>
    %29 = math.exp %28 : vector<2x8xf32>
    %cst_18 = arith.constant dense<0.000000e+00> : vector<2xf32>
    %30 = vector.multi_reduction <add>, %29, %cst_18 [1] : vector<2x8xf32> to vector<2xf32>
    %31 = vector.shape_cast %30 : vector<2xf32> to vector<2x1xf32>
    %32 = tpu.reciprocal %31 {approx = true} : vector<2x1xf32> -> vector<2x1xf32>
    %33 = arith.mulf %31, %32 : vector<2x1xf32>
    %cst_19 = arith.constant 2.000000e+00 : f32
    %34 = vector.broadcast %cst_19 : f32 to vector<2x1xf32>
    %35 = arith.subf %34, %33 : vector<2x1xf32>
    %36 = arith.mulf %32, %35 : vector<2x1xf32>
    %37 = vector.broadcast %36 : vector<2x1xf32> to vector<2x8xf32>
    %38 = arith.mulf %29, %37 : vector<2x8xf32>
    %c0_20 = arith.constant 0 : index
    %c0_21 = arith.constant 0 : index
    %39 = vector.load %arg10[%c0_20, %c0_21] : memref<2x8xf32, #tpu.memory_space<vmem>>, vector<2x8xf32>
    tpu.vector_store %arg10[%c0_20, %c0_21], %38 {strides = array<i32>} : memref<2x8xf32, #tpu.memory_space<vmem>>, vector<2x8xf32>,
    %40 = vector.shape_cast %38 : vector<2x8xf32> to vector<2x1x8xf32>
    %cst_22 = arith.constant dense<0.000000e+00> : vector<2x1x32xf32>
    %41 = tpu.matmul %40, %0, %cst_22 {dimension_numbers = #tpu.dot_dimension_numbers<[2], [1], [1], [2], [0, 0, 0, 1, 1, 2], [0], [0]>} : vector<2x1x8xf32>, vector<2x8x32xf32>, vector<2x1x32xf32> -> vector<2x1x32xf32>
    %42 = vector.shape_cast %41 : vector<2x1x32xf32> to vector<2x32xf32>
    %c0_23 = arith.constant 0 : index
    %c0_24 = arith.constant 0 : index
    %43 = vector.load %arg9[%c0_23, %c0_24] : memref<2x32xf32, #tpu.memory_space<vmem>>, vector<2x32xf32>
    tpu.vector_store %arg9[%c0_23, %c0_24], %42 {strides = array<i32>} : memref<2x32xf32, #tpu.memory_space<vmem>>, vector<2x32xf32>,
    return
  }
  func.func @transform_0(%arg0: i32) -> (i32, i32, i32) {
    %c0_i32 = arith.constant 0 : i32
    %c0_i32_0 = arith.constant 0 : i32
    %c0_i32_1 = arith.constant 0 : i32
    return %arg0, %c0_i32, %c0_i32_0 : i32, i32, i32
  }
  func.func @transform_1(%arg0: i32) -> (i32, i32) {
    %c0_i32 = arith.constant 0 : i32
    %c0_i32_0 = arith.constant 0 : i32
    return %arg0, %c0_i32 : i32, i32
  }
  func.func @transform_2(%arg0: i32) -> (i32, i32) {
    %c0_i32 = arith.constant 0 : i32
    %c0_i32_0 = arith.constant 0 : i32
    %c0_i32_1 = arith.constant 0 : i32
    return %c0_i32, %c0_i32_0 : i32, i32
  }
  func.func @transform_3(%arg0: i32) -> (i32, i32) {
    %c0_i32 = arith.constant 0 : i32
    %c0_i32_0 = arith.constant 0 : i32
    %c0_i32_1 = arith.constant 0 : i32
    return %c0_i32, %c0_i32_0 : i32, i32
  }
  func.func @transform_4(%arg0: i32) -> (i32, i32) {
    %c0_i32 = arith.constant 0 : i32
    %c0_i32_0 = arith.constant 0 : i32
    %c0_i32_1 = arith.constant 0 : i32
    return %c0_i32, %c0_i32_0 : i32, i32
  }
  func.func @transform_5(%arg0: i32) -> (i32, i32) {
    %c0_i32 = arith.constant 0 : i32
    %c0_i32_0 = arith.constant 0 : i32
    %c0_i32_1 = arith.constant 0 : i32
    return %c0_i32, %c0_i32_0 : i32, i32
  }
  func.func @transform_6(%arg0: i32) -> (i32, i32) {
    %c0_i32 = arith.constant 0 : i32
    %c0_i32_0 = arith.constant 0 : i32
    %c0_i32_1 = arith.constant 0 : i32
    return %c0_i32, %c0_i32_0 : i32, i32
  }
  func.func @transform_7(%arg0: i32) -> i32 {
    %c0_i32 = arith.constant 0 : i32
    %c0_i32_0 = arith.constant 0 : i32
    return %c0_i32 : i32
  }
  func.func @transform_8(%arg0: i32) -> (i32, i32) {
    %c0_i32 = arith.constant 0 : i32
    %c0_i32_0 = arith.constant 0 : i32
    return %arg0, %c0_i32 : i32, i32
  }
  func.func @transform_9(%arg0: i32) -> (i32, i32) {
    %c0_i32 = arith.constant 0 : i32
    %c0_i32_0 = arith.constant 0 : i32
    return %arg0, %c0_i32 : i32, i32
  }
}

</mosaic_0001>

<llo_original>
// kernel: tpu_custom_call.1
$region0: #{tpu_custom_call.1}
  #allocation0 [shape = 'u32[]', space=smem, size = 0x4, offset = 0x4, fixed_abs, tag = 'smem constant byte address 0x4 - core index']
  #allocation1 [shape = 'u32[144,128]{1,0:T(1,128)}', space=vmem, size = 0x12000, scoped, tag = 'internal scratch']
  #allocation2 [shape = 'f32[1]{0:T(128)S(6)}', space=smem, size = 0x200, scoped, tag = 'scoped memory for tpu_custom_call.1']
  %s0 = inlined_call_operand.vmem [shape: f32[2,8,32], index: 0, kind: input, shape index: {}]
  %s1 = inlined_call_operand.vmem [shape: f32[2,32], index: 1, kind: input, shape index: {}]
  %s2 = inlined_call_operand.vmem [shape: f32[32,8], index: 2, kind: input, shape index: {}]
  %s3 = inlined_call_operand.vmem [shape: f32[1,8], index: 3, kind: input, shape index: {}]
  %s4 = inlined_call_operand.vmem [shape: f32[32,8], index: 4, kind: input, shape index: {}]
  %s5 = inlined_call_operand.vmem [shape: f32[1,8], index: 5, kind: input, shape index: {}]
  %s6 = inlined_call_operand.vmem [shape: f32[1,8], index: 6, kind: input, shape index: {}]
  %s7 = inlined_call_operand.<no memory space> [shape: f32[1], index: 7, kind: input, shape index: {}]
  %s8 = inlined_call_operand.hbm [shape: f32[2,32], index: 8, kind: output, shape index: {0}]
  %s9 = inlined_call_operand.hbm [shape: f32[2,8], index: 9, kind: output, shape index: {1}]
  %10 = xla_tuple %s8, %s9
  %s11 = sld [smem:[#allocation0]]
  $region50: #{tpu_custom_call.1} parent=0
    _
  %s13 = ssub.s32 1, %s11
  %s14 = scalar_select 0, %s13, %s11
  %15 = sst [smem:[#allocation2]] %s7
  $region1: #{tpu_custom_call.1} parent=0
    #allocation3 [shape = 'u8[1024]{0}', space=vmem, size = 0x400, scoped, tag = 'output window, operand 0, single buffered']
    #allocation4 [shape = 's32[1]{0}', space=sflag, size = 0x4, scoped, tag = 'scoped memory for tpu_custom_call.1']
    #allocation5 [shape = 'u8[1024]{0}', space=vmem, size = 0x400, scoped, tag = 'output window, operand 1, single buffered']
    #allocation6 [shape = 's32[1]{0}', space=sflag, size = 0x4, scoped, tag = 'scoped memory for tpu_custom_call.1']
    %16 = vsyncpa [#allocation4], 0
    %17 = vsyncpa [#allocation6], 0
    // Predicated region
    $region2: #{tpu_custom_call.1} parent=1 // pred_check
      _
    $region3: #{tpu_custom_call.1} parent=1 // pred_check_branch
      %19 = sbr.rel (0) target = $region5
    $region4: #{tpu_custom_call.1} parent=1 // pred_region
      _
    $region5: #{tpu_custom_call.1} parent=1 // pred_fallthru
      _
    // Predicated region
    $region6: #{tpu_custom_call.1} parent=1 // pred_check
      _
    $region7: #{tpu_custom_call.1} parent=1 // pred_check_branch
      %21 = sbr.rel (0) target = $region9
    $region8: #{tpu_custom_call.1} parent=1 // pred_region
      _
    $region9: #{tpu_custom_call.1} parent=1 // pred_fallthru
      _
    // Predicated region
    $region10: #{tpu_custom_call.1} parent=1 // pred_check
      _
    $region11: #{tpu_custom_call.1} parent=1 // pred_check_branch
      %23 = sbr.rel (0) target = $region13
    $region12: #{tpu_custom_call.1} parent=1 // pred_region
      _
    $region13: #{tpu_custom_call.1} parent=1 // pred_fallthru
      _
    // Predicated region
    $region14: #{tpu_custom_call.1} parent=1 // pred_check
      _
    $region15: #{tpu_custom_call.1} parent=1 // pred_check_branch
      %25 = sbr.rel (0) target = $region17
    $region16: #{tpu_custom_call.1} parent=1 // pred_region
      _
    $region17: #{tpu_custom_call.1} parent=1 // pred_fallthru
      _
    // Predicated region
    $region18: #{tpu_custom_call.1} parent=1 // pred_check
      _
    $region19: #{tpu_custom_call.1} parent=1 // pred_check_branch
      %27 = sbr.rel (0) target = $region21
    $region20: #{tpu_custom_call.1} parent=1 // pred_region
      _
    $region21: #{tpu_custom_call.1} parent=1 // pred_fallthru
      _
    // Predicated region
    $region22: #{tpu_custom_call.1} parent=1 // pred_check
      _
    $region23: #{tpu_custom_call.1} parent=1 // pred_check_branch
      %29 = sbr.rel (0) target = $region25
    $region24: #{tpu_custom_call.1} parent=1 // pred_region
      _
    $region25: #{tpu_custom_call.1} parent=1 // pred_fallthru
      _
    // Predicated region
    $region26: #{tpu_custom_call.1} parent=1 // pred_check
      _
    $region27: #{tpu_custom_call.1} parent=1 // pred_check_branch
      %31 = sbr.rel (0) target = $region29
    $region28: #{tpu_custom_call.1} parent=1 // pred_region
      _
    $region29: #{tpu_custom_call.1} parent=1 // pred_fallthru
      _
    // Predicated region
    $region30: #{tpu_custom_call.1} parent=1 // pred_check
      _
    $region31: #{tpu_custom_call.1} parent=1 // pred_check_branch
      %33 = sbr.rel (0) target = $region33
    $region32: #{tpu_custom_call.1} parent=1 // pred_region
      _
    $region33: #{tpu_custom_call.1} parent=1 // pred_fallthru
      _
    %v34 = vld [vmem:[%s0] sm:$0xff]
    %v35 = vld [vmem:[%s0 + $0x8] sm:$0xff]
    %v36 = vld [vmem:[%s2] sm:$0xff]
    %v37 = vld [vmem:[%s2 + $0x8] sm:$0xff]
    %v38 = vld [vmem:[%s2 + $0x10] sm:$0xff]
    %v39 = vld [vmem:[%s2 + $0x18] sm:$0xff]
    %v40 = vld [vmem:[%s3] sm:$0x1]
    %v42 = vlaneseq
    %v43 = vshrl.u32 %v42, 7
    %v44 = vsub.s32 0, %v43
    %v45 = vrot.slane %v40, %v44
    %vm47 = vcmask 261120
    %v49 = vsel %vm47, %v34, 0
    %v52 = vsel %vm47, %v35, 0
    %54 = vmatprep.subr.mxu0 0.0
    %55 = vmatpush1.msra.mxu0 0.0
    %56 = vmatprep.subr.mxu0 0.0
    %57 = vmatpush1.msra.mxu0 0.0
    %58 = vmatprep.subr.mxu0 0.0
    %59 = vmatpush1.msra.mxu0 0.0
    %60 = vmatprep.subr.mxu0 0.0
    %61 = vmatpush1.msra.mxu0 0.0
    %62 = vmatprep.subr.mxu0 0.0
    %63 = vmatpush1.msra.mxu0 0.0
    %64 = vmatprep.subr.mxu0 0.0
    %65 = vmatpush1.msra.mxu0 0.0
    %66 = vmatprep.subr.mxu0 0.0
    %67 = vmatpush1.msra.mxu0 0.0
    %68 = vmatprep.subr.mxu0 0.0
    %69 = vmatpush1.msra.mxu0 0.0
    %70 = vmatprep.subr.mxu0 0.0
    %71 = vmatpush1.msra.mxu0 0.0
    %72 = vmatprep.subr.mxu0 0.0
    %73 = vmatpush1.msra.mxu0 0.0
    %74 = vmatprep.subr.mxu0 0.0
    %75 = vmatpush1.msra.mxu0 0.0
    %76 = vmatprep.subr.mxu0 0.0
    %77 = vmatpush1.msra.mxu0 0.0
    %78 = vmatprep.subr.mxu0 0.0
    %79 = vmatpush1.msra.mxu0 %v39
    %80 = vmatprep.subr.mxu0 0.0
    %81 = vmatpush1.msra.mxu0 %v38
    %82 = vmatprep.subr.mxu0 0.0
    %83 = vmatpush1.msra.mxu0 %v37
    %84 = vmatprep.subr.mxu0 0.0
    %85 = vmatpush1.msra.mxu0 %v36
    %86 = vmatprep.subr.mxu0 0.0
    %87 = vmatpush2.msra.mxu0 0.0
    %88 = vmatprep.subr.mxu0 0.0
    %89 = vmatpush2.msra.mxu0 0.0
    %90 = vmatprep.subr.mxu0 0.0
    %91 = vmatpush2.msra.mxu0 0.0
    %92 = vmatprep.subr.mxu0 0.0
    %93 = vmatpush2.msra.mxu0 0.0
    %94 = vmatprep.subr.mxu0 0.0
    %95 = vmatpush2.msra.mxu0 0.0
    %96 = vmatprep.subr.mxu0 0.0
    %97 = vmatpush2.msra.mxu0 0.0
    %98 = vmatprep.subr.mxu0 0.0
    %99 = vmatpush2.msra.mxu0 0.0
    %100 = vmatprep.subr.mxu0 0.0
    %101 = vmatpush2.msra.mxu0 0.0
    %102 = vmatprep.subr.mxu0 0.0
    %103 = vmatpush2.msra.mxu0 0.0
    %104 = vmatprep.subr.mxu0 0.0
    %105 = vmatpush2.msra.mxu0 0.0
    %106 = vmatprep.subr.mxu0 0.0
    %107 = vmatpush2.msra.mxu0 0.0
    %108 = vmatprep.subr.mxu0 0.0
    %109 = vmatpush2.msra.mxu0 0.0
    %110 = vmatprep.subr.mxu0 0.0
    %111 = vmatpush2.msra.mxu0 0.0
    %112 = vmatprep.subr.mxu0 0.0
    %113 = vmatpush2.msra.mxu0 0.0
    %114 = vmatprep.subr.mxu0 0.0
    %115 = vmatpush2.msra.mxu0 0.0
    %116 = vmatprep.subr.mxu0 0.0
    %117 = vmatpush2.msra.mxu0 0.0
    %118 = vmatprep.mubr.f32.mxu0 0.0
    %119 = vmatmul.mubr.f32.gmra.mxu0 %v49
    %v120 = vpop.f32.mrf.mxu0
    %v121 = vadd.f32 %v45, %v120
    %v122 = vpop.f32.mrf.mxu0
    %123 = vmatprep.mubr.f32.mxu0 0.0
    %124 = vmatmul.mubr.f32.gmra.mxu0 %v52
    %v125 = vpop.f32.mrf.mxu0
    %v126 = vadd.f32 %v45, %v125
    %v127 = vpop.f32.mrf.mxu0
    %128 = vdwg.mxu0
    %v129 = vld [vmem:[%s1] sm:$0x3]
    %v130 = vld [vmem:[%s4] sm:$0xff]
    %v131 = vld [vmem:[%s4 + $0x8] sm:$0xff]
    %v132 = vld [vmem:[%s4 + $0x10] sm:$0xff]
    %v133 = vld [vmem:[%s4 + $0x18] sm:$0xff]
    %v134 = vld [vmem:[%s5] sm:$0x1]
    %v136 = vlaneseq
    %v137 = vshrl.u32 %v136, 7
    %v138 = vsub.s32 0, %v137
    %v139 = vrot.slane %v134, %v138
    %v142 = vsel %vm47, %v129, 0
    %144 = vmatprep.subr.mxu0 0.0
    %145 = vmatpush1.msra.mxu0 0.0
    %146 = vmatprep.subr.mxu0 0.0
    %147 = vmatpush1.msra.mxu0 0.0
    %148 = vmatprep.subr.mxu0 0.0
    %149 = vmatpush1.msra.mxu0 0.0
    %150 = vmatprep.subr.mxu0 0.0
    %151 = vmatpush1.msra.mxu0 0.0
    %152 = vmatprep.subr.mxu0 0.0
    %153 = vmatpush1.msra.mxu0 0.0
    %154 = vmatprep.subr.mxu0 0.0
    %155 = vmatpush1.msra.mxu0 0.0
    %156 = vmatprep.subr.mxu0 0.0
    %157 = vmatpush1.msra.mxu0 0.0
    %158 = vmatprep.subr.mxu0 0.0
    %159 = vmatpush1.msra.mxu0 0.0
    %160 = vmatprep.subr.mxu0 0.0
    %161 = vmatpush1.msra.mxu0 0.0
    %162 = vmatprep.subr.mxu0 0.0
    %163 = vmatpush1.msra.mxu0 0.0
    %164 = vmatprep.subr.mxu0 0.0
    %165 = vmatpush1.msra.mxu0 0.0
    %166 = vmatprep.subr.mxu0 0.0
    %167 = vmatpush1.msra.mxu0 0.0
    %168 = vmatprep.subr.mxu0 0.0
    %169 = vmatpush1.msra.mxu0 %v133
    %170 = vmatprep.subr.mxu0 0.0
    %171 = vmatpush1.msra.mxu0 %v132
    %172 = vmatprep.subr.mxu0 0.0
    %173 = vmatpush1.msra.mxu0 %v131
    %174 = vmatprep.subr.mxu0 0.0
    %175 = vmatpush1.msra.mxu0 %v130
    %176 = vmatprep.subr.mxu0 0.0
    %177 = vmatpush2.msra.mxu0 0.0
    %178 = vmatprep.subr.mxu0 0.0
    %179 = vmatpush2.msra.mxu0 0.0
    %180 = vmatprep.subr.mxu0 0.0
    %181 = vmatpush2.msra.mxu0 0.0
    %182 = vmatprep.subr.mxu0 0.0
    %183 = vmatpush2.msra.mxu0 0.0
    %184 = vmatprep.subr.mxu0 0.0
    %185 = vmatpush2.msra.mxu0 0.0
    %186 = vmatprep.subr.mxu0 0.0
    %187 = vmatpush2.msra.mxu0 0.0
    %188 = vmatprep.subr.mxu0 0.0
    %189 = vmatpush2.msra.mxu0 0.0
    %190 = vmatprep.subr.mxu0 0.0
    %191 = vmatpush2.msra.mxu0 0.0
    %192 = vmatprep.subr.mxu0 0.0
    %193 = vmatpush2.msra.mxu0 0.0
    %194 = vmatprep.subr.mxu0 0.0
    %195 = vmatpush2.msra.mxu0 0.0
    %196 = vmatprep.subr.mxu0 0.0
    %197 = vmatpush2.msra.mxu0 0.0
    %198 = vmatprep.subr.mxu0 0.0
    %199 = vmatpush2.msra.mxu0 0.0
    %200 = vmatprep.subr.mxu0 0.0
    %201 = vmatpush2.msra.mxu0 0.0
    %202 = vmatprep.subr.mxu0 0.0
    %203 = vmatpush2.msra.mxu0 0.0
    %204 = vmatprep.subr.mxu0 0.0
    %205 = vmatpush2.msra.mxu0 0.0
    %206 = vmatprep.subr.mxu0 0.0
    %207 = vmatpush2.msra.mxu0 0.0
    %208 = vmatprep.mubr.f32.mxu0 0.0
    %209 = vmatmul.mubr.f32.gmra.mxu0 %v142
    %v210 = vpop.f32.mrf.mxu0
    %v211 = vadd.f32 %v139, %v210
    %v212 = vpop.f32.mrf.mxu0
    %213 = vdwg.mxu0
    %v214 = vlaneseq
    %v215 = vshrl.u32 %v214, 7
    %v216 = vsub.s32 0, %v215
    %v217 = vrot.slane %v211, %v216
    %219 = vbcast.lane.b32.xlu0 %v217, 256
    %v220 = vpop.permute.xlu0 %219
    %v221 = vlaneseq
    %v222 = vshrl.u32 %v221, 7
    %v223 = vsub.s32 1, %v222
    %v224 = vrot.slane %v211, %v223
    %226 = vbcast.lane.b32.xlu0 %v224, 256
    %v227 = vpop.permute.xlu0 %226
    %v228 = vadd.f32 %v121, %v220
    %v229 = vadd.f32 %v126, %v227
    %v230 = vtanh.pop %v228
    %v231 = vtanh.pop %v229
    %v232 = vld [vmem:[%s6] sm:$0x1]
    %v234 = vlaneseq
    %v235 = vshrl.u32 %v234, 7
    %v236 = vsub.s32 0, %v235
    %v237 = vrot.slane %v232, %v236
    %v239 = vmul.f32 %v230, %v237
    %v240 = vmul.f32 %v231, %v237
    %vm241 = vcmask 64512
    %v242 = vsel %vm241, %v239, 0.0
    %243 = vadd.xlane.f32.xlu0 %v242
    %v244 = vpop.xlane.xlu0 %243
    %v245 = vsel %vm241, %v240, 0.0
    %246 = vadd.xlane.f32.xlu0 %v245
    %v247 = vpop.xlane.xlu0 %246
    %s248 = sld [smem:[#allocation2]]
    %v249 = vstv %s248
    %v250 = vadd.f32 %v244, %v249
    %v251 = vadd.f32 %v247, %v249
    %v254 = vlaneseq
    %v255 = vand.u32 %v254, 127
    %v256 = vlaneseq
    %v257 = vshrl.u32 %v256, 7
    %v258 = vsub.s32 %v255, %v257
    %v259 = vrot.slane %v250, %v258
    %v260 = vlaneseq
    %v261 = vshrl.u32 %v260, 7
    %v262 = vsub.s32 %v255, %v261
    %v263 = vrot.slane %v251, %v262
    %vm264 = vcmask 1041409
    %v265 = vsel %vm264, %v263, %v259
    %vm267 = vcmask 58368
    %v268 = vsel %vm267, %v265, -inf
    %269 = vmax.xlane.f32.xlu0 %v268
    %v270 = vpop.xlane.xlu0 %269
    %v272 = vlaneseq
    %v273 = vshrl.u32 %v272, 7
    %v274 = vsub.s32 0, %v273
    %v275 = vrot.slane %v270, %v274
    %v276 = vlaneseq
    %v277 = vshrl.u32 %v276, 7
    %v278 = vsub.s32 1, %v277
    %v279 = vrot.slane %v270, %v278
    %v282 = vsub.f32 %v250, %v275
    %v283 = vsub.f32 %v251, %v279
    %v284 = vmul.f32 %v282, 1.442695
    %v285 = vpow.pop %v284
    %v286 = vmul.f32 %v283, 1.442695
    %v287 = vpow.pop %v286
    %290 = vset.pattern.permute.xlu0 0
    %291 = vperm.xlu0 %290, %v285
    %v292 = vpop.permute.xlu0 %291
    %293 = vset.pattern.permute.xlu0 0
    %294 = vperm.xlu0 %293, %v287
    %v295 = vpop.permute.xlu0 %294
    %v296 = vlaneseq
    %v297 = vshrl.u32 %v296, 7
    %v298 = vsub.s32 %v255, %v297
    %v299 = vrot.slane %v292, %v298
    %v300 = vlaneseq
    %v301 = vshrl.u32 %v300, 7
    %v302 = vsub.s32 %v255, %v301
    %v303 = vrot.slane %v295, %v302
    %v304 = vsel %vm264, %v303, %v299
    %v306 = vsel %vm267, %v304, 0.0
    %307 = vadd.xlane.f32.xlu0 %v306
    %v308 = vpop.xlane.xlu0 %307
    %v309 = vrcp.pop %v308
    %v310 = vmul.f32 %v308, %v309
    %v311 = vsub.f32 2.0, %v310
    %v312 = vmul.f32 %v309, %v311
    %v314 = vlaneseq
    %v315 = vshrl.u32 %v314, 7
    %v316 = vsub.s32 0, %v315
    %v317 = vrot.slane %v312, %v316
    %v318 = vlaneseq
    %v319 = vshrl.u32 %v318, 7
    %v320 = vsub.s32 1, %v319
    %v321 = vrot.slane %v312, %v320
    %v324 = vmul.f32 %v285, %v317
    %v325 = vmul.f32 %v287, %v321
    %328 = vset.pattern.permute.xlu0 0
    %329 = vperm.xlu0 %328, %v324
    %v330 = vpop.permute.xlu0 %329
    %331 = vset.pattern.permute.xlu0 0
    %332 = vperm.xlu0 %331, %v325
    %v333 = vpop.permute.xlu0 %332
    %v334 = vlaneseq
    %v335 = vshrl.u32 %v334, 7
    %v336 = vsub.s32 %v255, %v335
    %v337 = vrot.slane %v330, %v336
    %v338 = vlaneseq
    %v339 = vshrl.u32 %v338, 7
    %v340 = vsub.s32 %v255, %v339
    %v341 = vrot.slane %v333, %v340
    %v342 = vsel %vm264, %v341, %v337
    %344 = vst.msk [vmem:[#allocation5] sm:$0x3] %vm267, %v342
    %v345 = vsel %vm241, %v337, 0
    %347 = vmatprep.subr.mxu0 0.0
    %348 = vmatpush1.msra.mxu0 0.0
    %349 = vmatprep.subr.mxu0 0.0
    %350 = vmatpush1.msra.mxu0 0.0
    %351 = vmatprep.subr.mxu0 0.0
    %352 = vmatpush1.msra.mxu0 0.0
    %353 = vmatprep.subr.mxu0 0.0
    %354 = vmatpush1.msra.mxu0 0.0
    %355 = vmatprep.subr.mxu0 0.0
    %356 = vmatpush1.msra.mxu0 0.0
    %357 = vmatprep.subr.mxu0 0.0
    %358 = vmatpush1.msra.mxu0 0.0
    %359 = vmatprep.subr.mxu0 0.0
    %360 = vmatpush1.msra.mxu0 0.0
    %361 = vmatprep.subr.mxu0 0.0
    %362 = vmatpush1.msra.mxu0 0.0
    %363 = vmatprep.subr.mxu0 0.0
    %364 = vmatpush1.msra.mxu0 0.0
    %365 = vmatprep.subr.mxu0 0.0
    %366 = vmatpush1.msra.mxu0 0.0
    %367 = vmatprep.subr.mxu0 0.0
    %368 = vmatpush1.msra.mxu0 0.0
    %369 = vmatprep.subr.mxu0 0.0
    %370 = vmatpush1.msra.mxu0 0.0
    %371 = vmatprep.subr.mxu0 0.0
    %372 = vmatpush1.msra.mxu0 0.0
    %373 = vmatprep.subr.mxu0 0.0
    %374 = vmatpush1.msra.mxu0 0.0
    %375 = vmatprep.subr.mxu0 0.0
    %376 = vmatpush1.msra.mxu0 0.0
    %377 = vmatprep.subr.mxu0 0.0
    %378 = vmatpush1.msra.mxu0 %v34
    %379 = vmatprep.subr.mxu0 0.0
    %380 = vmatpush2.msra.mxu0 0.0
    %381 = vmatprep.subr.mxu0 0.0
    %382 = vmatpush2.msra.mxu0 0.0
    %383 = vmatprep.subr.mxu0 0.0
    %384 = vmatpush2.msra.mxu0 0.0
    %385 = vmatprep.subr.mxu0 0.0
    %386 = vmatpush2.msra.mxu0 0.0
    %387 = vmatprep.subr.mxu0 0.0
    %388 = vmatpush2.msra.mxu0 0.0
    %389 = vmatprep.subr.mxu0 0.0
    %390 = vmatpush2.msra.mxu0 0.0
    %391 = vmatprep.subr.mxu0 0.0
    %392 = vmatpush2.msra.mxu0 0.0
    %393 = vmatprep.subr.mxu0 0.0
    %394 = vmatpush2.msra.mxu0 0.0
    %395 = vmatprep.subr.mxu0 0.0
    %396 = vmatpush2.msra.mxu0 0.0
    %397 = vmatprep.subr.mxu0 0.0
    %398 = vmatpush2.msra.mxu0 0.0
    %399 = vmatprep.subr.mxu0 0.0
    %400 = vmatpush2.msra.mxu0 0.0
    %401 = vmatprep.subr.mxu0 0.0
    %402 = vmatpush2.msra.mxu0 0.0
    %403 = vmatprep.subr.mxu0 0.0
    %404 = vmatpush2.msra.mxu0 0.0
    %405 = vmatprep.subr.mxu0 0.0
    %406 = vmatpush2.msra.mxu0 0.0
    %407 = vmatprep.subr.mxu0 0.0
    %408 = vmatpush2.msra.mxu0 0.0
    %409 = vmatprep.subr.mxu0 0.0
    %410 = vmatpush2.msra.mxu0 0.0
    %411 = vmatprep.mubr.f32.mxu0 0.0
    %412 = vmatmul.mubr.f32.gmra.mxu0 %v345
    %v413 = vpop.f32.mrf.mxu0
    %v414 = vadd.f32 0.0, %v413
    %v415 = vpop.f32.mrf.mxu0
    %416 = vdwg.mxu0
    %v417 = vsel %vm241, %v341, 0
    %419 = vmatprep.subr.mxu0 0.0
    %420 = vmatpush1.msra.mxu0 0.0
    %421 = vmatprep.subr.mxu0 0.0
    %422 = vmatpush1.msra.mxu0 0.0
    %423 = vmatprep.subr.mxu0 0.0
    %424 = vmatpush1.msra.mxu0 0.0
    %425 = vmatprep.subr.mxu0 0.0
    %426 = vmatpush1.msra.mxu0 0.0
    %427 = vmatprep.subr.mxu0 0.0
    %428 = vmatpush1.msra.mxu0 0.0
    %429 = vmatprep.subr.mxu0 0.0
    %430 = vmatpush1.msra.mxu0 0.0
    %431 = vmatprep.subr.mxu0 0.0
    %432 = vmatpush1.msra.mxu0 0.0
    %433 = vmatprep.subr.mxu0 0.0
    %434 = vmatpush1.msra.mxu0 0.0
    %435 = vmatprep.subr.mxu0 0.0
    %436 = vmatpush1.msra.mxu0 0.0
    %437 = vmatprep.subr.mxu0 0.0
    %438 = vmatpush1.msra.mxu0 0.0
    %439 = vmatprep.subr.mxu0 0.0
    %440 = vmatpush1.msra.mxu0 0.0
    %441 = vmatprep.subr.mxu0 0.0
    %442 = vmatpush1.msra.mxu0 0.0
    %443 = vmatprep.subr.mxu0 0.0
    %444 = vmatpush1.msra.mxu0 0.0
    %445 = vmatprep.subr.mxu0 0.0
    %446 = vmatpush1.msra.mxu0 0.0
    %447 = vmatprep.subr.mxu0 0.0
    %448 = vmatpush1.msra.mxu0 0.0
    %449 = vmatprep.subr.mxu0 0.0
    %450 = vmatpush1.msra.mxu0 %v35
    %451 = vmatprep.subr.mxu0 0.0
    %452 = vmatpush2.msra.mxu0 0.0
    %453 = vmatprep.subr.mxu0 0.0
    %454 = vmatpush2.msra.mxu0 0.0
    %455 = vmatprep.subr.mxu0 0.0
    %456 = vmatpush2.msra.mxu0 0.0
    %457 = vmatprep.subr.mxu0 0.0
    %458 = vmatpush2.msra.mxu0 0.0
    %459 = vmatprep.subr.mxu0 0.0
    %460 = vmatpush2.msra.mxu0 0.0
    %461 = vmatprep.subr.mxu0 0.0
    %462 = vmatpush2.msra.mxu0 0.0
    %463 = vmatprep.subr.mxu0 0.0
    %464 = vmatpush2.msra.mxu0 0.0
    %465 = vmatprep.subr.mxu0 0.0
    %466 = vmatpush2.msra.mxu0 0.0
    %467 = vmatprep.subr.mxu0 0.0
    %468 = vmatpush2.msra.mxu0 0.0
    %469 = vmatprep.subr.mxu0 0.0
    %470 = vmatpush2.msra.mxu0 0.0
    %471 = vmatprep.subr.mxu0 0.0
    %472 = vmatpush2.msra.mxu0 0.0
    %473 = vmatprep.subr.mxu0 0.0
    %474 = vmatpush2.msra.mxu0 0.0
    %475 = vmatprep.subr.mxu0 0.0
    %476 = vmatpush2.msra.mxu0 0.0
    %477 = vmatprep.subr.mxu0 0.0
    %478 = vmatpush2.msra.mxu0 0.0
    %479 = vmatprep.subr.mxu0 0.0
    %480 = vmatpush2.msra.mxu0 0.0
    %481 = vmatprep.subr.mxu0 0.0
    %482 = vmatpush2.msra.mxu0 0.0
    %483 = vmatprep.mubr.f32.mxu0 0.0
    %484 = vmatmul.mubr.f32.gmra.mxu0 %v417
    %v485 = vpop.f32.mrf.mxu0
    %v486 = vadd.f32 0.0, %v485
    %v487 = vpop.f32.mrf.mxu0
    %488 = vdwg.mxu0
    %v491 = vrot.slane %v486, 7
    %v492 = vsel %vm264, %v491, %v414
    %vm494 = vcmask 254976
    %495 = vst.msk [vmem:[#allocation3] sm:$0x3] %vm494, %v492
    // Predicated region
    $region34: #{tpu_custom_call.1} parent=1 // pred_check
      _
    $region35: #{tpu_custom_call.1} parent=1 // pred_check_branch
      %497 = sbr.rel (0) target = $region37
    $region36: #{tpu_custom_call.1} parent=1 // pred_region
      %s499 = ssub.s32 32, 32
      %500 = vsyncadd [#allocation4], %s499
      %s502 = sshll.u32 [#allocation3], 4
      %s503 = int_to_ptr.vmem [resolvable:$true] %s502
      %505 = dma.vmem_to_hbm [thread:$0]  %s503, 32, %s8, [#allocation4]
    $region37: #{tpu_custom_call.1} parent=1 // pred_fallthru
      _
    // Predicated region
    $region38: #{tpu_custom_call.1} parent=1 // pred_check
      _
    $region39: #{tpu_custom_call.1} parent=1 // pred_check_branch
      %507 = sbr.rel (0) target = $region41
    $region40: #{tpu_custom_call.1} parent=1 // pred_region
      %s509 = ssub.s32 32, 32
      %510 = vsyncadd [#allocation6], %s509
      %s512 = sshll.u32 [#allocation5], 4
      %s513 = int_to_ptr.vmem [resolvable:$true] %s512
      %515 = dma.vmem_to_hbm [thread:$0]  %s513, 32, %s9, [#allocation6]
    $region41: #{tpu_custom_call.1} parent=1 // pred_fallthru
      _
    // Predicated region
    $region42: #{tpu_custom_call.1} parent=1 // pred_check
      _
    $region43: #{tpu_custom_call.1} parent=1 // pred_check_branch
      %517 = sbr.rel (0) target = $region45
    $region44: #{tpu_custom_call.1} parent=1 // pred_region
      %518 = dma.done [#allocation4], 32
    $region45: #{tpu_custom_call.1} parent=1 // pred_fallthru
      _
    // Predicated region
    $region46: #{tpu_custom_call.1} parent=1 // pred_check
      _
    $region47: #{tpu_custom_call.1} parent=1 // pred_check_branch
      %520 = sbr.rel (0) target = $region49
    $region48: #{tpu_custom_call.1} parent=1 // pred_region
      %521 = dma.done [#allocation6], 32
    $region49: #{tpu_custom_call.1} parent=1 // pred_fallthru
      _
    %522 = vsyncpa [#allocation4], 1
    %523 = vsyncpa [#allocation6], 1

</llo_original>
